<compile_context>
chip_gen: v7x
topology: tpu7x:2x2x1
jax: 0.10.0
libtpu: 0.0.40
codegen_flags: <defaults>
</compile_context>

<pallas_src>
import jax
import jax.numpy as jnp
from jax.experimental import pallas as pl
from jax.experimental.pallas import tpu as pltpu


def _round_up(n, m):
    return ((n + m - 1) // m) * m


def _cdiv(a, b):
    return -(-a // b)


def _policy_kernel(x_ref, w1_ref, b1_ref, w2_ref, b2_ref, out_ref):
    """Fused MLP forward: softmax(relu(x@W1+b1) @ W2 + b2, axis=-1), all f32."""
    # fc1 (MXU, f32 accumulate) + bias + ReLU.
    h = jnp.dot(x_ref[...], w1_ref[...], preferred_element_type=jnp.float32)
    h = jnp.maximum(h + b1_ref[...], 0.0)

    # fc2 (MXU, f32 accumulate) + bias.
    logits = jnp.dot(h, w2_ref[...], preferred_element_type=jnp.float32)
    logits = logits + b2_ref[...]

    # Numerically-stable softmax over the last axis.  Exact divide: the
    # (block_b, 1) column division is negligible and keeps row sums == 1.
    m = jnp.max(logits, axis=-1, keepdims=True)
    e = jnp.exp(logits - m)
    denom = jnp.sum(e, axis=-1, keepdims=True)
    out_ref[...] = (e / denom).astype(out_ref.dtype)


@jax.jit
def policy_net_forward(x, w1, b1, w2, b2):
    """x: (B, input_dim) f32.  Returns probs: (B, output_dim) f32.

    Weights are stored as (in_features, out_features): y = x @ W + b,
    i.e. PyTorch's x @ W_pt.T + b_pt.
    """
    B, d_in = x.shape
    d_h = w1.shape[1]
    d_out = w2.shape[1]

    b1 = jnp.reshape(b1, (1, d_h)).astype(jnp.float32)
    b2 = jnp.reshape(b2, (1, d_out)).astype(jnp.float32)
    x = x.astype(jnp.float32)
    w1 = w1.astype(jnp.float32)
    w2 = w2.astype(jnp.float32)

    # --- batch tiling: tile derived from B (no big padded tail) ------------
    cap = 1024                       # ~85%+ of HBM roofline; step overhead amortized
    n_steps = max(1, _cdiv(B, cap))
    if B >= 512:
        # Give v7x's 2 TensorCores at least one grid step each; extra step
        # overhead (~0.35us) is negligible on single-TC v5e/v6e.
        n_steps = max(n_steps, 2)
    block_b = _round_up(_cdiv(B, n_steps), 8)
    b_p = n_steps * block_b

    x_p = x if b_p == B else jnp.pad(x, ((0, b_p - B), (0, 0)))

    probs_p = pl.pallas_call(
        _policy_kernel,
        out_shape=jax.ShapeDtypeStruct((b_p, d_out), jnp.float32),
        grid_spec=pltpu.PrefetchScalarGridSpec(
            num_scalar_prefetch=0,
            grid=(n_steps,),
            in_specs=[
                pl.BlockSpec((block_b, d_in), lambda i: (i, 0)),  # x tile
                pl.BlockSpec((d_in, d_h), lambda i: (0, 0)),      # W1 (resident)
                pl.BlockSpec((1, d_h), lambda i: (0, 0)),          # b1
                pl.BlockSpec((d_h, d_out), lambda i: (0, 0)),      # W2
                pl.BlockSpec((1, d_out), lambda i: (0, 0)),        # b2
            ],
            out_specs=pl.BlockSpec((block_b, d_out), lambda i: (i, 0)),
        ),
        compiler_params=pltpu.CompilerParams(
            dimension_semantics=("parallel",),
        ),
    )(x_p, w1, b1, w2, b2)

    return probs_p if b_p == B else probs_p[:B]


def init_policy_params(key, input_dim, hidden_dim, output_dim):
    """Deterministic init mimicking PyTorch nn.Linear (U[-1/sqrt(fan_in), +])."""
    k1, k2, k3, k4 = jax.random.split(key, 4)
    bound1 = 1.0 / jnp.sqrt(jnp.float32(input_dim))
    bound2 = 1.0 / jnp.sqrt(jnp.float32(hidden_dim))
    w1 = jax.random.uniform(k1, (input_dim, hidden_dim), jnp.float32, -bound1, bound1)
    b1 = jax.random.uniform(k2, (1, hidden_dim), jnp.float32, -bound1, bound1)
    w2 = jax.random.uniform(k3, (hidden_dim, output_dim), jnp.float32, -bound2, bound2)
    b2 = jax.random.uniform(k4, (1, output_dim), jnp.float32, -bound2, bound2)
    return w1, b1, w2, b2


if __name__ == "__main__":
    # Small shapes consistent with the module: batch=8, input_dim=16,
    # hidden_dim=32, output_dim=8 (a small discrete-action policy).
    B, INPUT_DIM, HIDDEN_DIM, OUTPUT_DIM = 8, 16, 32, 8

    key = jax.random.PRNGKey(0)
    kx, kp = jax.random.split(key)
    x = jax.random.normal(kx, (B, INPUT_DIM), jnp.float32)
    w1, b1, w2, b2 = init_policy_params(kp, INPUT_DIM, HIDDEN_DIM, OUTPUT_DIM)

    probs = policy_net_forward(x, w1, b1, w2, b2)
    probs = jax.block_until_ready(probs)

    # Pure f32 reference of the PyTorch module's forward.
    h_ref = jnp.maximum(
        jnp.dot(x, w1, precision=jax.lax.Precision.HIGHEST) + b1, 0.0)
    logits_ref = jnp.dot(h_ref, w2, precision=jax.lax.Precision.HIGHEST) + b2
    probs_ref = jax.nn.softmax(logits_ref, axis=-1)

    assert probs.shape == (B, OUTPUT_DIM)
    assert jnp.allclose(jnp.sum(probs, axis=-1), 1.0, atol=1e-5)
    assert jnp.allclose(probs, probs_ref, atol=2e-3, rtol=2e-3)

    print("KERNEL_OK")
</pallas_src>

<mosaic_0001>
module attributes {stable_mosaic.version = 11 : i64} {
  func.func @_policy_kernel(%arg0: i32, %arg1: memref<8x16xf32, #tpu.memory_space<vmem>>, %arg2: memref<16x32xf32, #tpu.memory_space<vmem>>, %arg3: memref<1x32xf32, #tpu.memory_space<vmem>>, %arg4: memref<32x8xf32, #tpu.memory_space<vmem>>, %arg5: memref<1x8xf32, #tpu.memory_space<vmem>>, %arg6: memref<8x8xf32, #tpu.memory_space<vmem>>) attributes {dimension_semantics = [#tpu.dimension_semantics<parallel>], iteration_bounds = array<i64: 1>, scalar_prefetch = 0 : i64, scratch_operands = 0 : i64, tpu.core_type = #tpu.core_type<tc>, window_params = [{transform_indices = @transform_0, window_bounds = array<i64: 8, 16>}, {pipeline_mode = #tpu.pipeline_mode<synchronous>, transform_indices = @transform_1, window_bounds = array<i64: 16, 32>}, {pipeline_mode = #tpu.pipeline_mode<synchronous>, transform_indices = @transform_2, window_bounds = array<i64: 1, 32>}, {pipeline_mode = #tpu.pipeline_mode<synchronous>, transform_indices = @transform_3, window_bounds = array<i64: 32, 8>}, {pipeline_mode = #tpu.pipeline_mode<synchronous>, transform_indices = @transform_4, window_bounds = array<i64: 1, 8>}, {transform_indices = @transform_5, window_bounds = array<i64: 8, 8>}]} {
    %c0 = arith.constant 0 : index
    %c0_0 = arith.constant 0 : index
    %0 = vector.load %arg1[%c0, %c0_0] : memref<8x16xf32, #tpu.memory_space<vmem>>, vector<8x16xf32>
    %c0_1 = arith.constant 0 : index
    %c0_2 = arith.constant 0 : index
    %1 = vector.load %arg2[%c0_1, %c0_2] : memref<16x32xf32, #tpu.memory_space<vmem>>, vector<16x32xf32>
    %cst = arith.constant dense<0.000000e+00> : vector<8x32xf32>
    %2 = tpu.matmul %0, %1, %cst {dimension_numbers = #tpu.dot_dimension_numbers<[1], [0], [0], [1], [0, 0, 1, 1], [], []>} : vector<8x16xf32>, vector<16x32xf32>, vector<8x32xf32> -> vector<8x32xf32>
    %c0_3 = arith.constant 0 : index
    %c0_4 = arith.constant 0 : index
    %3 = vector.load %arg3[%c0_3, %c0_4] : memref<1x32xf32, #tpu.memory_space<vmem>>, vector<1x32xf32>
    %4 = vector.broadcast %3 : vector<1x32xf32> to vector<8x32xf32>
    %5 = arith.addf %2, %4 : vector<8x32xf32>
    %cst_5 = arith.constant 0.000000e+00 : f32
    %6 = vector.broadcast %cst_5 : f32 to vector<8x32xf32>
    %7 = arith.maximumf %5, %6 : vector<8x32xf32>
    %c0_6 = arith.constant 0 : index
    %c0_7 = arith.constant 0 : index
    %8 = vector.load %arg4[%c0_6, %c0_7] : memref<32x8xf32, #tpu.memory_space<vmem>>, vector<32x8xf32>
    %cst_8 = arith.constant dense<0.000000e+00> : vector<8x8xf32>
    %9 = tpu.matmul %7, %8, %cst_8 {dimension_numbers = #tpu.dot_dimension_numbers<[1], [0], [0], [1], [0, 0, 1, 1], [], []>} : vector<8x32xf32>, vector<32x8xf32>, vector<8x8xf32> -> vector<8x8xf32>
    %c0_9 = arith.constant 0 : index
    %c0_10 = arith.constant 0 : index
    %10 = vector.load %arg5[%c0_9, %c0_10] : memref<1x8xf32, #tpu.memory_space<vmem>>, vector<1x8xf32>
    %11 = vector.broadcast %10 : vector<1x8xf32> to vector<8x8xf32>
    %12 = arith.addf %9, %11 : vector<8x8xf32>
    %cst_11 = arith.constant dense<0xFF800000> : vector<8xf32>
    %13 = vector.multi_reduction <maximumf>, %12, %cst_11 [1] : vector<8x8xf32> to vector<8xf32>
    %14 = vector.shape_cast %13 : vector<8xf32> to vector<8x1xf32>
    %15 = vector.broadcast %14 : vector<8x1xf32> to vector<8x8xf32>
    %16 = arith.subf %12, %15 : vector<8x8xf32>
    %17 = math.exp %16 : vector<8x8xf32>
    %cst_12 = arith.constant dense<0.000000e+00> : vector<8xf32>
    %18 = vector.multi_reduction <add>, %17, %cst_12 [1] : vector<8x8xf32> to vector<8xf32>
    %19 = vector.shape_cast %18 : vector<8xf32> to vector<8x1xf32>
    %20 = vector.broadcast %19 : vector<8x1xf32> to vector<8x8xf32>
    %21 = arith.divf %17, %20 : vector<8x8xf32>
    %c0_13 = arith.constant 0 : index
    %c0_14 = arith.constant 0 : index
    %22 = vector.load %arg6[%c0_13, %c0_14] : memref<8x8xf32, #tpu.memory_space<vmem>>, vector<8x8xf32>
    tpu.vector_store %arg6[%c0_13, %c0_14], %21 {strides = array<i32>} : memref<8x8xf32, #tpu.memory_space<vmem>>, vector<8x8xf32>,
    return
  }
  func.func @transform_0(%arg0: i32) -> (i32, i32) {
    %c0_i32 = arith.constant 0 : i32
    %c0_i32_0 = arith.constant 0 : i32
    return %arg0, %c0_i32 : i32, i32
  }
  func.func @transform_1(%arg0: i32) -> (i32, i32) {
    %c0_i32 = arith.constant 0 : i32
    %c0_i32_0 = arith.constant 0 : i32
    %c0_i32_1 = arith.constant 0 : i32
    return %c0_i32, %c0_i32_0 : i32, i32
  }
  func.func @transform_2(%arg0: i32) -> (i32, i32) {
    %c0_i32 = arith.constant 0 : i32
    %c0_i32_0 = arith.constant 0 : i32
    %c0_i32_1 = arith.constant 0 : i32
    return %c0_i32, %c0_i32_0 : i32, i32
  }
  func.func @transform_3(%arg0: i32) -> (i32, i32) {
    %c0_i32 = arith.constant 0 : i32
    %c0_i32_0 = arith.constant 0 : i32
    %c0_i32_1 = arith.constant 0 : i32
    return %c0_i32, %c0_i32_0 : i32, i32
  }
  func.func @transform_4(%arg0: i32) -> (i32, i32) {
    %c0_i32 = arith.constant 0 : i32
    %c0_i32_0 = arith.constant 0 : i32
    %c0_i32_1 = arith.constant 0 : i32
    return %c0_i32, %c0_i32_0 : i32, i32
  }
  func.func @transform_5(%arg0: i32) -> (i32, i32) {
    %c0_i32 = arith.constant 0 : i32
    %c0_i32_0 = arith.constant 0 : i32
    return %arg0, %c0_i32 : i32, i32
  }
}

</mosaic_0001>

<llo_original>
// kernel: policy_net_forward.1
$region0: #{policy_net_forward.1}
  #allocation0 [shape = 'u32[]', space=smem, size = 0x4, offset = 0x4, fixed_abs, tag = 'smem constant byte address 0x4 - core index']
  #allocation1 [shape = 'u32[144,128]{1,0:T(1,128)}', space=vmem, size = 0x12000, scoped, tag = 'internal scratch']
  %s0 = inlined_call_operand.vmem [shape: f32[8,16], index: 0, kind: input, shape index: {}]
  %s1 = inlined_call_operand.vmem [shape: f32[16,32], index: 1, kind: input, shape index: {}]
  %s2 = inlined_call_operand.vmem [shape: f32[1,32], index: 2, kind: input, shape index: {}]
  %s3 = inlined_call_operand.vmem [shape: f32[32,8], index: 3, kind: input, shape index: {}]
  %s4 = inlined_call_operand.vmem [shape: f32[1,8], index: 4, kind: input, shape index: {}]
  %s5 = inlined_call_operand.hbm [shape: f32[8,8], index: 5, kind: output, shape index: {}]
  %s6 = sld [smem:[#allocation0]]
  $region30: #{policy_net_forward.1} parent=0
    _
  %s8 = ssub.s32 1, %s6
  %s9 = scalar_select 0, %s8, %s6
  $region1: #{policy_net_forward.1} parent=0
    #allocation2 [shape = 'u8[4096]{0}', space=vmem, size = 0x1000, scoped, tag = 'output window, operand 0, single buffered']
    #allocation3 [shape = 's32[1]{0}', space=sflag, size = 0x4, scoped, tag = 'scoped memory for policy_net_forward.1']
    %10 = vsyncpa [#allocation3], 0
    // Predicated region
    $region2: #{policy_net_forward.1} parent=1 // pred_check
      _
    $region3: #{policy_net_forward.1} parent=1 // pred_check_branch
      %12 = sbr.rel (0) target = $region5
    $region4: #{policy_net_forward.1} parent=1 // pred_region
      _
    $region5: #{policy_net_forward.1} parent=1 // pred_fallthru
      _
    // Predicated region
    $region6: #{policy_net_forward.1} parent=1 // pred_check
      _
    $region7: #{policy_net_forward.1} parent=1 // pred_check_branch
      %14 = sbr.rel (0) target = $region9
    $region8: #{policy_net_forward.1} parent=1 // pred_region
      _
    $region9: #{policy_net_forward.1} parent=1 // pred_fallthru
      _
    // Predicated region
    $region10: #{policy_net_forward.1} parent=1 // pred_check
      _
    $region11: #{policy_net_forward.1} parent=1 // pred_check_branch
      %16 = sbr.rel (0) target = $region13
    $region12: #{policy_net_forward.1} parent=1 // pred_region
      _
    $region13: #{policy_net_forward.1} parent=1 // pred_fallthru
      _
    // Predicated region
    $region14: #{policy_net_forward.1} parent=1 // pred_check
      _
    $region15: #{policy_net_forward.1} parent=1 // pred_check_branch
      %18 = sbr.rel (0) target = $region17
    $region16: #{policy_net_forward.1} parent=1 // pred_region
      _
    $region17: #{policy_net_forward.1} parent=1 // pred_fallthru
      _
    // Predicated region
    $region18: #{policy_net_forward.1} parent=1 // pred_check
      _
    $region19: #{policy_net_forward.1} parent=1 // pred_check_branch
      %20 = sbr.rel (0) target = $region21
    $region20: #{policy_net_forward.1} parent=1 // pred_region
      _
    $region21: #{policy_net_forward.1} parent=1 // pred_fallthru
      _
    %v21 = vld [vmem:[%s0] sm:$0xff]
    %v22 = vld [vmem:[%s1] sm:$0xff]
    %v23 = vld [vmem:[%s1 + $0x8] sm:$0xff]
    %v24 = vld [vmem:[%s2] sm:$0x1]
    %v26 = vlaneseq
    %v27 = vshrl.u32 %v26, 7
    %v28 = vsub.s32 0, %v27
    %v29 = vrot.slane %v24, %v28
    %vm31 = vcmask 130048
    %v33 = vsel %vm31, %v21, 0
    %35 = vmatprep.subr.mxu0 0.0
    %36 = vmatpush1.msra.mxu0 %v22
    %37 = vmatprep.subr.mxu0 0.0
    %38 = vmatpush1.msra.mxu0 %v23
    %39 = vmatprep.subr.mxu0 0.0
    %40 = vmatpush1.msra.mxu0 0.0
    %41 = vmatprep.subr.mxu0 0.0
    %42 = vmatpush1.msra.mxu0 0.0
    %43 = vmatprep.subr.mxu0 0.0
    %44 = vmatpush1.msra.mxu0 0.0
    %45 = vmatprep.subr.mxu0 0.0
    %46 = vmatpush1.msra.mxu0 0.0
    %47 = vmatprep.subr.mxu0 0.0
    %48 = vmatpush1.msra.mxu0 0.0
    %49 = vmatprep.subr.mxu0 0.0
    %50 = vmatpush1.msra.mxu0 0.0
    %51 = vmatprep.subr.mxu0 0.0
    %52 = vmatpush1.msra.mxu0 0.0
    %53 = vmatprep.subr.mxu0 0.0
    %54 = vmatpush1.msra.mxu0 0.0
    %55 = vmatprep.subr.mxu0 0.0
    %56 = vmatpush1.msra.mxu0 0.0
    %57 = vmatprep.subr.mxu0 0.0
    %58 = vmatpush1.msra.mxu0 0.0
    %59 = vmatprep.subr.mxu0 0.0
    %60 = vmatpush1.msra.mxu0 0.0
    %61 = vmatprep.subr.mxu0 0.0
    %62 = vmatpush1.msra.mxu0 0.0
    %63 = vmatprep.subr.mxu0 0.0
    %64 = vmatpush1.msra.mxu0 0.0
    %65 = vmatprep.subr.mxu0 0.0
    %66 = vmatpush1.msra.mxu0 0.0
    %67 = vmatprep.subr.mxu0 0.0
    %68 = vmatpush1.msra.mxu0 0.0
    %69 = vmatprep.subr.mxu0 0.0
    %70 = vmatpush1.msra.mxu0 0.0
    %71 = vmatprep.subr.mxu0 0.0
    %72 = vmatpush1.msra.mxu0 0.0
    %73 = vmatprep.subr.mxu0 0.0
    %74 = vmatpush1.msra.mxu0 0.0
    %75 = vmatprep.subr.mxu0 0.0
    %76 = vmatpush1.msra.mxu0 0.0
    %77 = vmatprep.subr.mxu0 0.0
    %78 = vmatpush1.msra.mxu0 0.0
    %79 = vmatprep.subr.mxu0 0.0
    %80 = vmatpush1.msra.mxu0 0.0
    %81 = vmatprep.subr.mxu0 0.0
    %82 = vmatpush1.msra.mxu0 0.0
    %83 = vmatprep.subr.mxu0 0.0
    %84 = vmatpush1.msra.mxu0 0.0
    %85 = vmatprep.subr.mxu0 0.0
    %86 = vmatpush1.msra.mxu0 0.0
    %87 = vmatprep.subr.mxu0 0.0
    %88 = vmatpush1.msra.mxu0 0.0
    %89 = vmatprep.subr.mxu0 0.0
    %90 = vmatpush1.msra.mxu0 0.0
    %91 = vmatprep.subr.mxu0 0.0
    %92 = vmatpush1.msra.mxu0 0.0
    %93 = vmatprep.subr.mxu0 0.0
    %94 = vmatpush1.msra.mxu0 0.0
    %95 = vmatprep.subr.mxu0 0.0
    %96 = vmatpush1.msra.mxu0 0.0
    %97 = vmatprep.subr.mxu0 0.0
    %98 = vmatpush1.msra.mxu0 0.0
    %99 = vmatprep.mubr.f32.mxu0 0.0
    %100 = vmatmul.mubr.f32.gmra.mrb[0].mxu0 %v33
    %v101 = vpop.f32.mrb[0].mxu0
    %v102 = vadd.f32 %v29, %v101
    %v103 = vpop.f32.mrb[0].mxu0
    %104 = vdwg.mxu0
    %v105 = vmax.f32 %v102, 0.0
    %v106 = vld [vmem:[%s3] sm:$0xff]
    %v107 = vld [vmem:[%s3 + $0x8] sm:$0xff]
    %v108 = vld [vmem:[%s3 + $0x10] sm:$0xff]
    %v109 = vld [vmem:[%s3 + $0x18] sm:$0xff]
    %v110 = vld [vmem:[%s4] sm:$0x1]
    %v112 = vlaneseq
    %v113 = vshrl.u32 %v112, 7
    %v114 = vsub.s32 0, %v113
    %v115 = vrot.slane %v110, %v114
    %vm117 = vcmask 261120
    %v119 = vsel %vm117, %v105, 0
    %121 = vmatprep.subr.mxu0 0.0
    %122 = vmatpush1.msra.mxu0 %v106
    %123 = vmatprep.subr.mxu0 0.0
    %124 = vmatpush1.msra.mxu0 %v107
    %125 = vmatprep.subr.mxu0 0.0
    %126 = vmatpush1.msra.mxu0 %v108
    %127 = vmatprep.subr.mxu0 0.0
    %128 = vmatpush1.msra.mxu0 %v109
    %129 = vmatprep.subr.mxu0 0.0
    %130 = vmatpush1.msra.mxu0 0.0
    %131 = vmatprep.subr.mxu0 0.0
    %132 = vmatpush1.msra.mxu0 0.0
    %133 = vmatprep.subr.mxu0 0.0
    %134 = vmatpush1.msra.mxu0 0.0
    %135 = vmatprep.subr.mxu0 0.0
    %136 = vmatpush1.msra.mxu0 0.0
    %137 = vmatprep.subr.mxu0 0.0
    %138 = vmatpush1.msra.mxu0 0.0
    %139 = vmatprep.subr.mxu0 0.0
    %140 = vmatpush1.msra.mxu0 0.0
    %141 = vmatprep.subr.mxu0 0.0
    %142 = vmatpush1.msra.mxu0 0.0
    %143 = vmatprep.subr.mxu0 0.0
    %144 = vmatpush1.msra.mxu0 0.0
    %145 = vmatprep.subr.mxu0 0.0
    %146 = vmatpush1.msra.mxu0 0.0
    %147 = vmatprep.subr.mxu0 0.0
    %148 = vmatpush1.msra.mxu0 0.0
    %149 = vmatprep.subr.mxu0 0.0
    %150 = vmatpush1.msra.mxu0 0.0
    %151 = vmatprep.subr.mxu0 0.0
    %152 = vmatpush1.msra.mxu0 0.0
    %153 = vmatprep.subr.mxu0 0.0
    %154 = vmatpush1.msra.mxu0 0.0
    %155 = vmatprep.subr.mxu0 0.0
    %156 = vmatpush1.msra.mxu0 0.0
    %157 = vmatprep.subr.mxu0 0.0
    %158 = vmatpush1.msra.mxu0 0.0
    %159 = vmatprep.subr.mxu0 0.0
    %160 = vmatpush1.msra.mxu0 0.0
    %161 = vmatprep.subr.mxu0 0.0
    %162 = vmatpush1.msra.mxu0 0.0
    %163 = vmatprep.subr.mxu0 0.0
    %164 = vmatpush1.msra.mxu0 0.0
    %165 = vmatprep.subr.mxu0 0.0
    %166 = vmatpush1.msra.mxu0 0.0
    %167 = vmatprep.subr.mxu0 0.0
    %168 = vmatpush1.msra.mxu0 0.0
    %169 = vmatprep.subr.mxu0 0.0
    %170 = vmatpush1.msra.mxu0 0.0
    %171 = vmatprep.subr.mxu0 0.0
    %172 = vmatpush1.msra.mxu0 0.0
    %173 = vmatprep.subr.mxu0 0.0
    %174 = vmatpush1.msra.mxu0 0.0
    %175 = vmatprep.subr.mxu0 0.0
    %176 = vmatpush1.msra.mxu0 0.0
    %177 = vmatprep.subr.mxu0 0.0
    %178 = vmatpush1.msra.mxu0 0.0
    %179 = vmatprep.subr.mxu0 0.0
    %180 = vmatpush1.msra.mxu0 0.0
    %181 = vmatprep.subr.mxu0 0.0
    %182 = vmatpush1.msra.mxu0 0.0
    %183 = vmatprep.subr.mxu0 0.0
    %184 = vmatpush1.msra.mxu0 0.0
    %185 = vmatprep.mubr.f32.mxu0 0.0
    %186 = vmatmul.mubr.f32.gmra.mrb[0].mxu0 %v119
    %v187 = vpop.f32.mrb[0].mxu0
    %v188 = vadd.f32 %v115, %v187
    %v189 = vpop.f32.mrb[0].mxu0
    %190 = vdwg.mxu0
    %vm191 = vcmask 64512
    %v192 = vsel %vm191, %v188, -inf
    %193 = vmax.xlane.f32.xlu0 %v192
    %v194 = vpop.xlane.xlu0 %193
    %v195 = vsub.f32 %v188, %v194
    %v196 = vmul.f32 %v195, 1.442695
    %v197 = vpow.pop %v196
    %v198 = vsel %vm191, %v197, 0.0
    %199 = vadd.xlane.f32.xlu0 %v198
    %v200 = vpop.xlane.xlu0 %199
    %v201 = vrcp.pop %v200
    %v202 = vmul.f32 %v197, %v201
    %203 = vst.msk [vmem:[#allocation2] sm:$0xff] %vm191, %v202
    // Predicated region
    $region22: #{policy_net_forward.1} parent=1 // pred_check
      _
    $region23: #{policy_net_forward.1} parent=1 // pred_check_branch
      %205 = sbr.rel (0) target = $region25
    $region24: #{policy_net_forward.1} parent=1 // pred_region
      %s207 = ssub.s32 128, 128
      %208 = vsyncadd [#allocation3], %s207
      %s210 = sshll.u32 [#allocation2], 4
      %s211 = int_to_ptr.vmem [resolvable:$true] %s210
      %213 = dma.vmem_to_hbm [thread:$0]  %s211, 128, %s5, [#allocation3]
    $region25: #{policy_net_forward.1} parent=1 // pred_fallthru
      _
    // Predicated region
    $region26: #{policy_net_forward.1} parent=1 // pred_check
      _
    $region27: #{policy_net_forward.1} parent=1 // pred_check_branch
      %215 = sbr.rel (0) target = $region29
    $region28: #{policy_net_forward.1} parent=1 // pred_region
      %216 = dma.done [#allocation3], 128
    $region29: #{policy_net_forward.1} parent=1 // pred_fallthru
      _
    %217 = vsyncpa [#allocation3], 1

</llo_original>
